<compile_context>
chip_gen: v7x
topology: tpu7x:2x2x1
jax: 0.10.0
libtpu: 0.0.40
codegen_flags: <defaults>
</compile_context>

<pallas_src>
import functools

import jax
import jax.numpy as jnp
from jax import lax
from jax.experimental import pallas as pl
from jax.experimental.pallas import tpu as pltpu

_EPS = 1e-5
_MXU_DTYPE = jnp.bfloat16      # MXU operand dtype (f32 accumulation)
_STORE_DTYPE = jnp.bfloat16    # conv-output activation storage (halves HBM passes)


def _round_up(x, m):
    return (x + m - 1) // m * m


def _vmem_limit_bytes():
    """Generation-aware scoped-VMEM limit (v7x: 64 MiB physical; v5e/v6e: 128)."""
    cap = 128 * 1024 * 1024
    try:
        cap = int(pltpu.get_tpu_info().vmem_capacity_bytes)
    except Exception:
        pass
    frac = 0.62 if cap <= 64 * 1024 * 1024 else 0.75
    return int(cap * frac)


def _pick_row_tile(ho, wo, c_in4, c_pad, c_out, vmem_budget):
    """Largest legal divisor of Ho whose per-step working set fits the budget."""
    wp = wo + 1

    def est_vmem(th):
        m_tile = th * wo
        return (
            2 * (th + 1) * wp * c_in4 * 2          # planes main+halo blocks, 2 buffers, bf16
            + 2 * 4 * c_in4 * c_pad * 2            # weights, 2 buffers, bf16
            + 2 * (m_tile * c_out * 2 + 2 * c_pad * 4)   # conv-out + stats tiles, 2 buffers
            + m_tile * c_pad * 4                   # f32 accumulator scratch
            + 2 * c_pad * 4                        # optional bias
        )

    # (m_tile % 8 == 0) keeps the flattened-row out_spec block legal when tiled.
    legal = [t for t in range(1, ho + 1)
             if ho % t == 0 and ((t * wo) % 8 == 0 or t == ho)]
    fits = [t for t in legal if t * wo <= 4096 and est_vmem(t) <= vmem_budget]
    return max(fits) if fits else min(legal)


# ----------------------------- Pallas kernel ------------------------------- #

def _conv_stats_kernel(xm_ref, xh_ref, w_ref, *rest, th, wo, c_in4, c_pad, c_out,
                       add_bias):
    """One (image, row-tile): stride-2 k=4 conv as 4 shifted K=4*Cin matmuls with
    f32 VMEM accumulation, bf16 store of the real channels, and per-tile
    (mean, M2) BatchNorm statistics."""
    if add_bias:
        b_ref, o_ref, stats_ref, acc_ref = rest
    else:
        o_ref, stats_ref, acc_ref = rest

    # (th+1, Wo+1, 4*Cin) bf16 slab: th main rows + the 1-row halo.
    slab = jnp.concatenate([xm_ref[0], xh_ref[0]], axis=0)

    m_tile = th * wo
    for i, (dh, dw) in enumerate(((0, 0), (0, 1), (1, 0), (1, 1))):
        tap = slab[dh:dh + th, dw:dw + wo, :].reshape(m_tile, c_in4)
        part = jnp.dot(tap, w_ref[dh, dw], preferred_element_type=jnp.float32)
        if i == 0:
            acc_ref[...] = part          # seed: no zero-fill + add
        else:
            acc_ref[...] += part

    acc = acc_ref[...]
    if add_bias:
        acc = acc + b_ref[...]

    # Store only the real channels; the 128-wide lane pad lives only in VMEM.
    o_ref[0] = acc[:, :c_out].astype(o_ref.dtype)

    # Per-tile BatchNorm statistics from the f32 accumulator: (mean, M2).
    inv_cnt = 1.0 / float(m_tile)
    mu = jnp.sum(acc, axis=0, keepdims=True) * inv_cnt
    d = acc - mu
    m2 = jnp.sum(d * d, axis=0, keepdims=True)
    stats_ref[0, 0] = jnp.concatenate([mu, m2], axis=0)


# ------------------------------ host wrapper ------------------------------- #

@functools.partial(jax.jit, static_argnames=("activation", "batch_norm"))
def conv_block(x_nchw, weight, bias, gamma, beta, *,
               activation=True, batch_norm=True):
    """Pallas ConvBlock forward.  x: (N, C_in, H, W) NCHW; returns NCHW f32."""
    ksize, stride, pad = 4, 2, 1                 # module defaults
    c_out, c_in, kh_, kw_ = weight.shape
    n, cx, h, w = x_nchw.shape
    assert (kh_, kw_) == (ksize, ksize) and cx == c_in
    assert h % 2 == 0 and w % 2 == 0
    ho, wo = h // 2, w // 2                      # (H + 2 - 4)//2 + 1 == H//2
    hp, wp = ho + 1, wo + 1
    c_in4 = 4 * c_in
    c_pad = _round_up(c_out, 128)                # MXU / accumulator lanes (VMEM only)

    vmem_limit = _vmem_limit_bytes()
    th = _pick_row_tile(ho, wo, c_in4, c_pad, c_out, vmem_budget=vmem_limit // 2)
    n_row_tiles = ho // th

    # ---- XLA pre-pass: LeakyReLU -> bf16 cast -> pad -> 2x2 space-to-depth. ----
    # planes[n, I, J, (2a+b)*Cin + c] = pad(lrelu(x))[n, 2I+a, 2J+b, c]   (bf16)
    x = jnp.transpose(x_nchw, (0, 2, 3, 1))
    if activation:
        x = jnp.where(x >= 0, x, 0.2 * x)        # LeakyReLU(0.2) in f32, then cast
    x = x.astype(_MXU_DTYPE)
    xp = jnp.pad(x, ((0, 0), (pad, pad), (pad, pad), (0, 0)))
    planes = xp.reshape(n, hp, 2, wp, 2, c_in)
    planes = jnp.transpose(planes, (0, 1, 3, 2, 4, 5)).reshape(n, hp, wp, c_in4)

    # weight (Cout,Cin,4,4) -> (dh, dw, 4*Cin, Cpad): 16 taps fold into 4 matmuls
    # of K = 4*Cin (one per (dh,dw) output shift).
    wt = jnp.transpose(weight, (2, 3, 1, 0)).reshape(2, 2, 2, 2, c_in, c_out)
    wt = jnp.transpose(wt, (0, 2, 1, 3, 4, 5)).reshape(2, 2, c_in4, c_out)
    wt = jnp.pad(wt, ((0, 0), (0, 0), (0, 0), (0, c_pad - c_out))).astype(_MXU_DTYPE)

    add_bias = not batch_norm    # conv bias cancels exactly under training-mode BN
    kernel = functools.partial(
        _conv_stats_kernel, th=th, wo=wo, c_in4=c_in4, c_pad=c_pad, c_out=c_out,
        add_bias=add_bias)

    in_specs = [
        pl.BlockSpec((1, th, wp, c_in4), lambda i, r: (i, r, 0, 0)),
        # Halo: the single row r*th + th of the SAME planes array (block size 1
        # along Hp, so the returned index is the element row).
        pl.BlockSpec((1, 1, wp, c_in4), lambda i, r, _th=th: (i, r * _th + _th, 0, 0)),
        pl.BlockSpec((2, 2, c_in4, c_pad), lambda i, r: (0, 0, 0, 0)),
    ]
    operands = [planes, planes, wt]
    if add_bias:
        b_pad = jnp.pad(bias.astype(jnp.float32), (0, c_pad - c_out)).reshape(1, c_pad)
        in_specs.append(pl.BlockSpec((1, c_pad), lambda i, r: (0, 0)))
        operands.append(b_pad)

    conv_out, stats = pl.pallas_call(
        kernel,
        out_shape=(jax.ShapeDtypeStruct((n, ho * wo, c_out), _STORE_DTYPE),
                   jax.ShapeDtypeStruct((n, n_row_tiles, 2, c_pad), jnp.float32)),
        grid=(n, n_row_tiles),
        in_specs=in_specs,
        out_specs=(pl.BlockSpec((1, th * wo, c_out), lambda i, r: (i, r, 0)),
                   pl.BlockSpec((1, 1, 2, c_pad), lambda i, r: (i, r, 0, 0))),
        scratch_shapes=[pltpu.VMEM((th * wo, c_pad), jnp.float32)],
        compiler_params=pltpu.CompilerParams(
            dimension_semantics=("parallel", "parallel"),
            vmem_limit_bytes=vmem_limit),
    )(*operands)
    # TODO(synk): for very large Cin/Cout add a K (4*Cin) grid axis (accumulator
    # carried across it) and a Cout tile axis to bound weight/accumulator VMEM.

    y = conv_out.astype(jnp.float32).reshape(n, ho, wo, c_out)
    if batch_norm:
        # Chan/Welford combine of the per-tile (mean, M2) statistics (stable).
        cnt = float(th * wo)
        mu_t = stats[:, :, 0, :c_out].reshape(-1, c_out)
        m2_t = stats[:, :, 1, :c_out].reshape(-1, c_out)
        t_total = mu_t.shape[0]
        mean = jnp.mean(mu_t, axis=0)
        var = (jnp.sum(m2_t, axis=0)
               + cnt * jnp.sum((mu_t - mean) ** 2, axis=0)) / (t_total * cnt)
        var = jnp.maximum(var, 0.0)              # biased variance (training mode)
        scale = gamma.astype(jnp.float32) * lax.rsqrt(var + _EPS)
        shift = beta.astype(jnp.float32) - mean * scale
        y = y * scale + shift                    # fused by XLA with the transpose below

    # TODO(synk): skip this NHWC->NCHW transpose when the consumer accepts NHWC.
    return jnp.transpose(y, (0, 3, 1, 2))


# ------------------------------ reference (JAX) ----------------------------- #

def conv_block_ref(x_nchw, weight, bias, gamma, beta, *, quantize=True,
                   activation=True, batch_norm=True):
    x = jnp.where(x_nchw >= 0, x_nchw, 0.2 * x_nchw) if activation else x_nchw
    w = weight
    if quantize:   # emulate bf16 MXU operands (f32 accumulation)
        x = x.astype(jnp.bfloat16).astype(jnp.float32)
        w = w.astype(jnp.bfloat16).astype(jnp.float32)
    y = lax.conv_general_dilated(
        x, w, window_strides=(2, 2), padding=((1, 1), (1, 1)),
        dimension_numbers=("NCHW", "OIHW", "NCHW"),
        preferred_element_type=jnp.float32)
    y = y + bias[None, :, None, None]
    if quantize:   # emulate bf16 activation storage of the conv output
        y = y.astype(jnp.bfloat16).astype(jnp.float32)
    if not batch_norm:
        return y
    mean = jnp.mean(y, axis=(0, 2, 3), keepdims=True)
    var = jnp.mean((y - mean) ** 2, axis=(0, 2, 3), keepdims=True)
    y = (y - mean) * lax.rsqrt(var + _EPS)
    return y * gamma[None, :, None, None] + beta[None, :, None, None]


# ---------------------------------- main ------------------------------------ #

if __name__ == "__main__":
    key = jax.random.PRNGKey(0)
    k_x, k_w, k_b = jax.random.split(key, 3)

    N, C_IN, H, W = 2, 4, 16, 16
    C_OUT = 8

    x = jax.random.normal(k_x, (N, C_IN, H, W), dtype=jnp.float32)
    weight = 0.1 * jax.random.normal(k_w, (C_OUT, C_IN, 4, 4), dtype=jnp.float32)
    bias = 0.1 * jax.random.normal(k_b, (C_OUT,), dtype=jnp.float32)
    gamma = jnp.ones((C_OUT,), dtype=jnp.float32)   # fresh BatchNorm2d affine init
    beta = jnp.zeros((C_OUT,), dtype=jnp.float32)

    out = jax.block_until_ready(conv_block(x, weight, bias, gamma, beta))
    assert out.shape == (N, C_OUT, H // 2, W // 2), out.shape

    # Check vs a reference that models the same bf16 operand + storage rounding.
    ref_q = conv_block_ref(x, weight, bias, gamma, beta, quantize=True)
    err_q = float(jnp.max(jnp.abs(out - ref_q)))
    assert err_q < 3e-2, err_q
    # Loose sanity check vs the pure-f32 reference (bounds all bf16 rounding).
    ref_f = conv_block_ref(x, weight, bias, gamma, beta, quantize=False)
    err_f = float(jnp.max(jnp.abs(out - ref_f)))
    assert err_f < 1e-1, err_f

    # Exercise the no-activation / no-BN path (in-kernel bias add, no BN pass).
    out2 = jax.block_until_ready(
        conv_block(x, weight, bias, gamma, beta, activation=False, batch_norm=False))
    ref2 = conv_block_ref(x, weight, bias, gamma, beta, quantize=True,
                          activation=False, batch_norm=False)
    assert float(jnp.max(jnp.abs(out2 - ref2))) < 5e-3

    print("KERNEL_OK")
</pallas_src>

<mosaic_0001>
module attributes {stable_mosaic.version = 11 : i64} {
  func.func @_conv_stats_kernel(%arg0: i32, %arg1: i32, %arg2: memref<1x8x9x16xbf16, #tpu.memory_space<vmem>>, %arg3: memref<1x1x9x16xbf16, #tpu.memory_space<vmem>>, %arg4: memref<2x2x16x128xbf16, #tpu.memory_space<vmem>>, %arg5: memref<1x64x8xbf16, #tpu.memory_space<vmem>>, %arg6: memref<1x1x2x128xf32, #tpu.memory_space<vmem>>, %arg7: memref<64x128xf32, #tpu.memory_space<vmem>>) attributes {dimension_semantics = [#tpu.dimension_semantics<parallel>, #tpu.dimension_semantics<parallel>], iteration_bounds = array<i64: 2, 1>, scalar_prefetch = 0 : i64, scratch_operands = 1 : i64, tpu.core_type = #tpu.core_type<tc>, window_params = [{transform_indices = @transform_0, window_bounds = array<i64: 1, 8, 9, 16>}, {transform_indices = @transform_1, window_bounds = array<i64: 1, 1, 9, 16>}, {pipeline_mode = #tpu.pipeline_mode<synchronous>, transform_indices = @transform_2, window_bounds = array<i64: 2, 2, 16, 128>}, {transform_indices = @transform_3, window_bounds = array<i64: 1, 64, 8>}, {transform_indices = @transform_4, window_bounds = array<i64: 1, 1, 2, 128>}]} {
    %c0 = arith.constant 0 : index
    %c0_0 = arith.constant 0 : index
    %c0_1 = arith.constant 0 : index
    %c0_2 = arith.constant 0 : index
    %0 = vector.load %arg2[%c0, %c0_0, %c0_1, %c0_2] : memref<1x8x9x16xbf16, #tpu.memory_space<vmem>>, vector<1x8x9x16xbf16>
    %1 = vector.shape_cast %0 : vector<1x8x9x16xbf16> to vector<8x9x16xbf16>
    %c0_3 = arith.constant 0 : index
    %c0_4 = arith.constant 0 : index
    %c0_5 = arith.constant 0 : index
    %c0_6 = arith.constant 0 : index
    %2 = vector.load %arg3[%c0_3, %c0_4, %c0_5, %c0_6] : memref<1x1x9x16xbf16, #tpu.memory_space<vmem>>, vector<1x1x9x16xbf16>
    %3 = vector.shape_cast %2 : vector<1x1x9x16xbf16> to vector<1x9x16xbf16>
    %4 = tpu.concatenate %1, %3 in 0 : vector<8x9x16xbf16>, vector<1x9x16xbf16> -> vector<9x9x16xbf16>
    %5 = vector.extract_strided_slice %4 {offsets = [0, 0, 0], sizes = [8, 8, 16], strides = [1, 1, 1]} : vector<9x9x16xbf16> to vector<8x8x16xbf16>
    %6 = vector.shape_cast %5 : vector<8x8x16xbf16> to vector<64x16xbf16>
    %c0_7 = arith.constant 0 : index
    %c0_8 = arith.constant 0 : index
    %c0_9 = arith.constant 0 : index
    %c0_10 = arith.constant 0 : index
    %7 = vector.load %arg4[%c0_7, %c0_8, %c0_9, %c0_10] : memref<2x2x16x128xbf16, #tpu.memory_space<vmem>>, vector<1x1x16x128xbf16>
    %8 = vector.shape_cast %7 : vector<1x1x16x128xbf16> to vector<16x128xbf16>
    %cst = arith.constant dense<0.000000e+00> : vector<64x128xf32>
    %9 = tpu.matmul %6, %8, %cst {dimension_numbers = #tpu.dot_dimension_numbers<[1], [0], [0], [1], [0, 0, 1, 1], [], []>} : vector<64x16xbf16>, vector<16x128xbf16>, vector<64x128xf32> -> vector<64x128xf32>
    %c0_11 = arith.constant 0 : index
    %c0_12 = arith.constant 0 : index
    %10 = vector.load %arg7[%c0_11, %c0_12] : memref<64x128xf32, #tpu.memory_space<vmem>>, vector<64x128xf32>
    tpu.vector_store %arg7[%c0_11, %c0_12], %9 {strides = array<i32>} : memref<64x128xf32, #tpu.memory_space<vmem>>, vector<64x128xf32>,
    %11 = vector.extract_strided_slice %4 {offsets = [0, 1, 0], sizes = [8, 8, 16], strides = [1, 1, 1]} : vector<9x9x16xbf16> to vector<8x8x16xbf16>
    %12 = vector.shape_cast %11 : vector<8x8x16xbf16> to vector<64x16xbf16>
    %c0_13 = arith.constant 0 : index
    %c1 = arith.constant 1 : index
    %c0_14 = arith.constant 0 : index
    %c0_15 = arith.constant 0 : index
    %13 = vector.load %arg4[%c0_13, %c1, %c0_14, %c0_15] : memref<2x2x16x128xbf16, #tpu.memory_space<vmem>>, vector<1x1x16x128xbf16>
    %14 = vector.shape_cast %13 : vector<1x1x16x128xbf16> to vector<16x128xbf16>
    %cst_16 = arith.constant dense<0.000000e+00> : vector<64x128xf32>
    %15 = tpu.matmul %12, %14, %cst_16 {dimension_numbers = #tpu.dot_dimension_numbers<[1], [0], [0], [1], [0, 0, 1, 1], [], []>} : vector<64x16xbf16>, vector<16x128xbf16>, vector<64x128xf32> -> vector<64x128xf32>
    %c0_17 = arith.constant 0 : index
    %c0_18 = arith.constant 0 : index
    %16 = vector.load %arg7[%c0_17, %c0_18] : memref<64x128xf32, #tpu.memory_space<vmem>>, vector<64x128xf32>
    %17 = arith.addf %16, %15 : vector<64x128xf32>
    %c0_19 = arith.constant 0 : index
    %c0_20 = arith.constant 0 : index
    %18 = vector.load %arg7[%c0_19, %c0_20] : memref<64x128xf32, #tpu.memory_space<vmem>>, vector<64x128xf32>
    tpu.vector_store %arg7[%c0_19, %c0_20], %17 {strides = array<i32>} : memref<64x128xf32, #tpu.memory_space<vmem>>, vector<64x128xf32>,
    %19 = vector.extract_strided_slice %4 {offsets = [1, 0, 0], sizes = [8, 8, 16], strides = [1, 1, 1]} : vector<9x9x16xbf16> to vector<8x8x16xbf16>
    %20 = vector.shape_cast %19 : vector<8x8x16xbf16> to vector<64x16xbf16>
    %c1_21 = arith.constant 1 : index
    %c0_22 = arith.constant 0 : index
    %c0_23 = arith.constant 0 : index
    %c0_24 = arith.constant 0 : index
    %21 = vector.load %arg4[%c1_21, %c0_22, %c0_23, %c0_24] : memref<2x2x16x128xbf16, #tpu.memory_space<vmem>>, vector<1x1x16x128xbf16>
    %22 = vector.shape_cast %21 : vector<1x1x16x128xbf16> to vector<16x128xbf16>
    %cst_25 = arith.constant dense<0.000000e+00> : vector<64x128xf32>
    %23 = tpu.matmul %20, %22, %cst_25 {dimension_numbers = #tpu.dot_dimension_numbers<[1], [0], [0], [1], [0, 0, 1, 1], [], []>} : vector<64x16xbf16>, vector<16x128xbf16>, vector<64x128xf32> -> vector<64x128xf32>
    %c0_26 = arith.constant 0 : index
    %c0_27 = arith.constant 0 : index
    %24 = vector.load %arg7[%c0_26, %c0_27] : memref<64x128xf32, #tpu.memory_space<vmem>>, vector<64x128xf32>
    %25 = arith.addf %24, %23 : vector<64x128xf32>
    %c0_28 = arith.constant 0 : index
    %c0_29 = arith.constant 0 : index
    %26 = vector.load %arg7[%c0_28, %c0_29] : memref<64x128xf32, #tpu.memory_space<vmem>>, vector<64x128xf32>
    tpu.vector_store %arg7[%c0_28, %c0_29], %25 {strides = array<i32>} : memref<64x128xf32, #tpu.memory_space<vmem>>, vector<64x128xf32>,
    %27 = vector.extract_strided_slice %4 {offsets = [1, 1, 0], sizes = [8, 8, 16], strides = [1, 1, 1]} : vector<9x9x16xbf16> to vector<8x8x16xbf16>
    %28 = vector.shape_cast %27 : vector<8x8x16xbf16> to vector<64x16xbf16>
    %c1_30 = arith.constant 1 : index
    %c1_31 = arith.constant 1 : index
    %c0_32 = arith.constant 0 : index
    %c0_33 = arith.constant 0 : index
    %29 = vector.load %arg4[%c1_30, %c1_31, %c0_32, %c0_33] : memref<2x2x16x128xbf16, #tpu.memory_space<vmem>>, vector<1x1x16x128xbf16>
    %30 = vector.shape_cast %29 : vector<1x1x16x128xbf16> to vector<16x128xbf16>
    %cst_34 = arith.constant dense<0.000000e+00> : vector<64x128xf32>
    %31 = tpu.matmul %28, %30, %cst_34 {dimension_numbers = #tpu.dot_dimension_numbers<[1], [0], [0], [1], [0, 0, 1, 1], [], []>} : vector<64x16xbf16>, vector<16x128xbf16>, vector<64x128xf32> -> vector<64x128xf32>
    %c0_35 = arith.constant 0 : index
    %c0_36 = arith.constant 0 : index
    %32 = vector.load %arg7[%c0_35, %c0_36] : memref<64x128xf32, #tpu.memory_space<vmem>>, vector<64x128xf32>
    %33 = arith.addf %32, %31 : vector<64x128xf32>
    %c0_37 = arith.constant 0 : index
    %c0_38 = arith.constant 0 : index
    %34 = vector.load %arg7[%c0_37, %c0_38] : memref<64x128xf32, #tpu.memory_space<vmem>>, vector<64x128xf32>
    tpu.vector_store %arg7[%c0_37, %c0_38], %33 {strides = array<i32>} : memref<64x128xf32, #tpu.memory_space<vmem>>, vector<64x128xf32>,
    %c0_39 = arith.constant 0 : index
    %c0_40 = arith.constant 0 : index
    %35 = vector.load %arg7[%c0_39, %c0_40] : memref<64x128xf32, #tpu.memory_space<vmem>>, vector<64x128xf32>
    %36 = vector.extract_strided_slice %35 {offsets = [0, 0], sizes = [64, 8], strides = [1, 1]} : vector<64x128xf32> to vector<64x8xf32>
    %37 = arith.truncf %36 : vector<64x8xf32> to vector<64x8xbf16>
    %c0_41 = arith.constant 0 : index
    %c0_42 = arith.constant 0 : index
    %c0_43 = arith.constant 0 : index
    %38 = vector.load %arg5[%c0_41, %c0_42, %c0_43] : memref<1x64x8xbf16, #tpu.memory_space<vmem>>, vector<1x64x8xbf16>
    %39 = vector.shape_cast %38 : vector<1x64x8xbf16> to vector<64x8xbf16>
    %40 = vector.shape_cast %37 : vector<64x8xbf16> to vector<1x64x8xbf16>
    tpu.vector_store %arg5[%c0_41, %c0_42, %c0_43], %40 {strides = array<i32>} : memref<1x64x8xbf16, #tpu.memory_space<vmem>>, vector<1x64x8xbf16>,
    %cst_44 = arith.constant dense<0.000000e+00> : vector<128xf32>
    %41 = vector.multi_reduction <add>, %35, %cst_44 [0] : vector<64x128xf32> to vector<128xf32>
    %42 = vector.shape_cast %41 : vector<128xf32> to vector<1x128xf32>
    %cst_45 = arith.constant 1.562500e-02 : f32
    %43 = vector.broadcast %cst_45 : f32 to vector<1x128xf32>
    %44 = arith.mulf %42, %43 : vector<1x128xf32>
    %45 = vector.broadcast %44 : vector<1x128xf32> to vector<64x128xf32>
    %46 = arith.subf %35, %45 : vector<64x128xf32>
    %47 = arith.mulf %46, %46 : vector<64x128xf32>
    %cst_46 = arith.constant dense<0.000000e+00> : vector<128xf32>
    %48 = vector.multi_reduction <add>, %47, %cst_46 [0] : vector<64x128xf32> to vector<128xf32>
    %49 = vector.shape_cast %48 : vector<128xf32> to vector<1x128xf32>
    %50 = tpu.concatenate %44, %49 in 0 : vector<1x128xf32>, vector<1x128xf32> -> vector<2x128xf32>
    %c0_47 = arith.constant 0 : index
    %c0_48 = arith.constant 0 : index
    %c0_49 = arith.constant 0 : index
    %c0_50 = arith.constant 0 : index
    %51 = vector.load %arg6[%c0_47, %c0_48, %c0_49, %c0_50] : memref<1x1x2x128xf32, #tpu.memory_space<vmem>>, vector<1x1x2x128xf32>
    %52 = vector.shape_cast %51 : vector<1x1x2x128xf32> to vector<2x128xf32>
    %53 = vector.shape_cast %50 : vector<2x128xf32> to vector<1x1x2x128xf32>
    tpu.vector_store %arg6[%c0_47, %c0_48, %c0_49, %c0_50], %53 {strides = array<i32>} : memref<1x1x2x128xf32, #tpu.memory_space<vmem>>, vector<1x1x2x128xf32>,
    return
  }
  func.func @transform_0(%arg0: i32, %arg1: i32) -> (i32, i32, i32, i32) {
    %c0_i32 = arith.constant 0 : i32
    %c0_i32_0 = arith.constant 0 : i32
    %c0_i32_1 = arith.constant 0 : i32
    return %arg0, %arg1, %c0_i32, %c0_i32_0 : i32, i32, i32, i32
  }
  func.func @transform_1(%arg0: i32, %arg1: i32) -> (i32, i32, i32, i32) {
    %c8_i32 = arith.constant 8 : i32
    %0 = arith.muli %arg1, %c8_i32 : i32
    %c8_i32_0 = arith.constant 8 : i32
    %1 = arith.addi %0, %c8_i32_0 : i32
    %c0_i32 = arith.constant 0 : i32
    %c0_i32_1 = arith.constant 0 : i32
    %c0_i32_2 = arith.constant 0 : i32
    return %arg0, %1, %c0_i32, %c0_i32_1 : i32, i32, i32, i32
  }
  func.func @transform_2(%arg0: i32, %arg1: i32) -> (i32, i32, i32, i32) {
    %c0_i32 = arith.constant 0 : i32
    %c0_i32_0 = arith.constant 0 : i32
    %c0_i32_1 = arith.constant 0 : i32
    %c0_i32_2 = arith.constant 0 : i32
    %c0_i32_3 = arith.constant 0 : i32
    return %c0_i32, %c0_i32_0, %c0_i32_1, %c0_i32_2 : i32, i32, i32, i32
  }
  func.func @transform_3(%arg0: i32, %arg1: i32) -> (i32, i32, i32) {
    %c0_i32 = arith.constant 0 : i32
    %c0_i32_0 = arith.constant 0 : i32
    return %arg0, %arg1, %c0_i32 : i32, i32, i32
  }
  func.func @transform_4(%arg0: i32, %arg1: i32) -> (i32, i32, i32, i32) {
    %c0_i32 = arith.constant 0 : i32
    %c0_i32_0 = arith.constant 0 : i32
    %c0_i32_1 = arith.constant 0 : i32
    return %arg0, %arg1, %c0_i32, %c0_i32_0 : i32, i32, i32, i32
  }
}

</mosaic_0001>

<llo_original>
// kernel: conv_block.1
$region0: #{conv_block.1}
  #allocation0 [shape = 'u32[]', space=smem, size = 0x4, offset = 0x4, fixed_abs, tag = 'smem constant byte address 0x4 - core index']
  #allocation1 [shape = 'u32[144,128]{1,0:T(1,128)}', space=vmem, size = 0x12000, scoped, tag = 'internal scratch']
  #allocation2 [shape = 'f32[64,128]{1,0:T(8,128)}', space=vmem, size = 0x8000, scoped, tag = 'scratch operand']
  %s0 = inlined_call_operand.hbm [shape: bf16[2,9,9,16], index: 0, kind: input, shape index: {}, may-alias: {0,1}]
  %s1 = inlined_call_operand.hbm [shape: bf16[2,9,9,16], index: 1, kind: input, shape index: {}, may-alias: {0,1}]
  %s2 = inlined_call_operand.hbm [shape: bf16[2,2,16,128], index: 2, kind: input, shape index: {}]
  %s3 = inlined_call_operand.hbm [shape: bf16[2,64,8], index: 3, kind: output, shape index: {0}]
  %s4 = inlined_call_operand.hbm [shape: f32[2,1,2,128], index: 4, kind: output, shape index: {1}]
  %5 = xla_tuple %s3, %s4
  %s6 = sld [smem:[#allocation0]]
  $region65: #{conv_block.1} parent=0
    _
  %s8 = ssub.s32 1, %s6
  %s9 = scalar_select 0, %s8, %s6
  $region1: #{conv_block.1} parent=0
    #allocation3 [shape = 'u8[65536]{0}', space=vmem, size = 0x10000, scoped, tag = 'input window, operand 0']
    #allocation4 [shape = 's32[2]{0}', space=sflag, size = 0x8, scoped, tag = 'scoped memory for conv_block.1']
    #allocation5 [shape = 's32[2]{0}', space=sflag, size = 0x8, scoped, tag = 'scoped memory for conv_block.1']
    #allocation6 [shape = 'u8[8192]{0}', space=vmem, size = 0x2000, scoped, tag = 'input window, operand 1']
    #allocation7 [shape = 's32[2]{0}', space=sflag, size = 0x8, scoped, tag = 'scoped memory for conv_block.1']
    #allocation8 [shape = 'u8[16384]{0}', space=vmem, size = 0x4000, scoped, tag = 'input window, operand 2, single buffered']
    #allocation9 [shape = 'u8[32768]{0}', space=vmem, size = 0x8000, scoped, tag = 'output window, operand 0']
    #allocation10 [shape = 'u8[2048]{0}', space=vmem, size = 0x800, scoped, tag = 'output window, operand 1']
    #allocation11 [shape = 's32[2]{0}', space=sflag, size = 0x8, scoped, tag = 'scoped memory for conv_block.1']
    %10 = vsyncpa [#allocation4], 0
    %s11 = scalar_lea.sflag [#allocation4], 1
    %12 = vsyncpa %s11, 0
    %13 = vsyncpa [#allocation7], 0
    %s14 = scalar_lea.sflag [#allocation7], 1
    %15 = vsyncpa %s14, 0
    %16 = vsyncpa [#allocation5], 0
    %s17 = scalar_lea.sflag [#allocation5], 1
    %18 = vsyncpa %s17, 0
    %19 = vsyncpa [#allocation11], 0
    %s20 = scalar_lea.sflag [#allocation11], 1
    %21 = vsyncpa %s20, 0
    loop: start=0, step=1, limit=4
    $region2: #{conv_block.1} parent=1 // loop_pre_header
      _
    $region3: #{conv_block.1} parent=1 // loop_header
      %s23 = sphi 0, %s27
      %p24 = scmp.ge.s32.totalorder %s23, 4
      %s30 = sphi 0, %s42
      %s31 = sphi 0, %s38
      %s32 = sphi 0, %s30
      %s33 = sphi 0, %s31
      %s34 = sphi 0, %s32
      %s35 = sphi 0, %s33
      %s47 = sphi 0, %s49
      %s50 = sphi 0, %s47
      %s51 = sphi 0, %s50
      %s67 = sphi 0, %s51
      %s79 = sphi 0, %s81
      %s82 = sphi 0, %s79
      %s83 = sphi 0, %s82
      %s99 = sphi 0, %s83
      %s103 = sphi 0, %s103
      %s105 = sphi 0, %s103
      %s106 = sphi 0, %s105
      %s120 = sphi 0, %s106
      %s128 = sphi 0, %s130
      %s131 = sphi 0, %s128
      %s132 = sphi 0, %s131
      %s148 = sphi 0, %s132
      %s156 = sphi 0, %s158
      %s159 = sphi 0, %s156
      %s160 = sphi 0, %s159
      %s176 = sphi 0, %s160
    $region4: #{conv_block.1} parent=1 // loop_header_branch
      %26 = sbr.rel (%p24) target = $region8
    $region5: #{conv_block.1} parent=1 // loop_body
      %s28 = ssub.s32 %s23, 1
      %s29 = ssub.s32 %s23, 2
      %s36 = sadd.s32 1, %s31
      %p37 = scmp.ge.s32.totalorder %s36, 1
      %s38 = scalar_select %p37, 0, %s36
      %s39 = sadd.s32 1, %s30
      %s40 = scalar_select %p37, %s39, %s30
      %p41 = scmp.ge.s32.totalorder %s40, 2
      %s42 = scalar_select %p41, 0, %s40
      %s43 = ssub.s32 %s30, %s42
      %s44 = ssub.s32 %s31, %s38
      %s45 = sor.u32 %s43, %s44
      %p46 = scmp.eq.s32.totalorder %s45, 0
      %s48 = sadd.s32 %s47, 1
      %s49 = scalar_select %p46, %s47, %s48
      %p52 = pneg %p46
      %p53 = scmp.eq.s32.totalorder %s23, 1
      %p54 = por %p52, %p53
      %p55 = scmp.ne.s32.totalorder %s47, %s50
      %p56 = scmp.eq.s32.totalorder %s23, 0
      %p57 = por %p55, %p56
      %p58 = scmp.ne.s32.totalorder %s47, %s50
      %p59 = scmp.eq.s32.totalorder %s28, 1
      %p60 = por %p58, %p59
      %p61 = scmp.ne.s32.totalorder %s50, %s51
      %p62 = scmp.eq.s32.totalorder %s28, 0
      %p63 = por %p61, %p62
      %p64 = scmp.ne.s32.totalorder %s50, %s51
      %p65 = scmp.eq.s32.totalorder %s29, 1
      %p66 = por %p64, %p65
      %p68 = scmp.ne.s32.totalorder %s51, %s67
      %p69 = scmp.eq.s32.totalorder %s29, 0
      %p70 = por %p68, %p69
      %s71 = smul.u32 %s31, 8
      %s72 = sadd.s32 %s71, 8
      %s73 = smul.u32 %s38, 8
      %s74 = sadd.s32 %s73, 8
      %s75 = ssub.s32 %s30, %s42
      %s76 = ssub.s32 %s72, %s74
      %s77 = sor.u32 %s75, %s76
      %p78 = scmp.eq.s32.totalorder %s77, 0
      %s80 = sadd.s32 %s79, 1
      %s81 = scalar_select %p78, %s79, %s80
      %p84 = pneg %p78
      %p85 = scmp.eq.s32.totalorder %s23, 1
      %p86 = por %p84, %p85
      %p87 = scmp.ne.s32.totalorder %s79, %s82
      %p88 = scmp.eq.s32.totalorder %s23, 0
      %p89 = por %p87, %p88
      %p90 = scmp.ne.s32.totalorder %s79, %s82
      %p91 = scmp.eq.s32.totalorder %s28, 1
      %p92 = por %p90, %p91
      %p93 = scmp.ne.s32.totalorder %s82, %s83
      %p94 = scmp.eq.s32.totalorder %s28, 0
      %p95 = por %p93, %p94
      %p96 = scmp.ne.s32.totalorder %s82, %s83
      %p97 = scmp.eq.s32.totalorder %s29, 1
      %p98 = por %p96, %p97
      %p100 = scmp.ne.s32.totalorder %s83, %s99
      %p101 = scmp.eq.s32.totalorder %s29, 0
      %p102 = por %p100, %p101
      %s104 = sadd.s32 %s103, 1
      %p107 = scmp.eq.s32.totalorder %s23, 1
      %p108 = scmp.ne.s32.totalorder %s103, %s105
      %p109 = scmp.eq.s32.totalorder %s23, 0
      %p110 = por %p108, %p109
      %p111 = scmp.ne.s32.totalorder %s103, %s105
      %p112 = scmp.eq.s32.totalorder %s28, 1
      %p113 = por %p111, %p112
      %p114 = scmp.ne.s32.totalorder %s105, %s106
      %p115 = scmp.eq.s32.totalorder %s28, 0
      %p116 = por %p114, %p115
      %p117 = scmp.ne.s32.totalorder %s105, %s106
      %p118 = scmp.eq.s32.totalorder %s29, 1
      %p119 = por %p117, %p118
      %p121 = scmp.ne.s32.totalorder %s106, %s120
      %p122 = scmp.eq.s32.totalorder %s29, 0
      %p123 = por %p121, %p122
      %s124 = ssub.s32 %s30, %s42
      %s125 = ssub.s32 %s31, %s38
      %s126 = sor.u32 %s124, %s125
      %p127 = scmp.eq.s32.totalorder %s126, 0
      %s129 = sadd.s32 %s128, 1
      %s130 = scalar_select %p127, %s128, %s129
      %p133 = pneg %p127
      %p134 = scmp.eq.s32.totalorder %s23, 1
      %p135 = por %p133, %p134
      %p136 = scmp.ne.s32.totalorder %s128, %s131
      %p137 = scmp.eq.s32.totalorder %s23, 0
      %p138 = por %p136, %p137
      %p139 = scmp.ne.s32.totalorder %s128, %s131
      %p140 = scmp.eq.s32.totalorder %s28, 1
      %p141 = por %p139, %p140
      %p142 = scmp.ne.s32.totalorder %s131, %s132
      %p143 = scmp.eq.s32.totalorder %s28, 0
      %p144 = por %p142, %p143
      %p145 = scmp.ne.s32.totalorder %s131, %s132
      %p146 = scmp.eq.s32.totalorder %s29, 1
      %p147 = por %p145, %p146
      %p149 = scmp.ne.s32.totalorder %s132, %s148
      %p150 = scmp.eq.s32.totalorder %s29, 0
      %p151 = por %p149, %p150
      %s152 = ssub.s32 %s30, %s42
      %s153 = ssub.s32 %s31, %s38
      %s154 = sor.u32 %s152, %s153
      %p155 = scmp.eq.s32.totalorder %s154, 0
      %s157 = sadd.s32 %s156, 1
      %s158 = scalar_select %p155, %s156, %s157
      %p161 = pneg %p155
      %p162 = scmp.eq.s32.totalorder %s23, 1
      %p163 = por %p161, %p162
      %p164 = scmp.ne.s32.totalorder %s156, %s159
      %p165 = scmp.eq.s32.totalorder %s23, 0
      %p166 = por %p164, %p165
      %p167 = scmp.ne.s32.totalorder %s156, %s159
      %p168 = scmp.eq.s32.totalorder %s28, 1
      %p169 = por %p167, %p168
      %p170 = scmp.ne.s32.totalorder %s159, %s160
      %p171 = scmp.eq.s32.totalorder %s28, 0
      %p172 = por %p170, %p171
      %p173 = scmp.ne.s32.totalorder %s159, %s160
      %p174 = scmp.eq.s32.totalorder %s29, 1
      %p175 = por %p173, %p174
      %p177 = scmp.ne.s32.totalorder %s160, %s176
      %p178 = scmp.eq.s32.totalorder %s29, 0
      %p179 = por %p177, %p178
      %p180 = scmp.le.s32.totalorder 1, %s23
      %p181 = scmp.lt.s32.totalorder %s23, 3
      %p182 = pnand %p180, %p181
      %p183 = pneg %p182
      // Predicated region
      $region9: #{conv_block.1} parent=5 // pred_check
        _
      $region10: #{conv_block.1} parent=5 // pred_check_branch
        %185 = sbr.rel (%p182) target = $region12
      $region11: #{conv_block.1} parent=5 // pred_region
        %s186 = ssub.s32 %s23, 1
        // Predicated region
        $region13: #{conv_block.1} parent=11 // pred_check
          %p187 = pneg %p116
        $region14: #{conv_block.1} parent=11 // pred_check_branch
          %189 = sbr.rel (%p187) target = $region16
        $region15: #{conv_block.1} parent=11 // pred_region
          %s191 = ssub.s32 512, 512
          %192 = vsyncadd [#allocation7], %s191
          %s193 = sshll.u32 [#allocation8], 4
          %s194 = int_to_ptr.vmem [resolvable:$true] %s193
          %199 = dma.hbm_to_vmem [thread:$0]  %s2, 512, %s194, [#allocation7], 64, 64, 4
        $region16: #{conv_block.1} parent=11 // pred_fallthru
          _
      $region12: #{conv_block.1} parent=5 // pred_fallthru
        _
      %p200 = scmp.lt.s32.totalorder %s23, 2
      // Predicated region
      $region17: #{conv_block.1} parent=5 // pred_check
        %p201 = pneg %p200
      $region18: #{conv_block.1} parent=5 // pred_check_branch
        %203 = sbr.rel (%p201) target = $region20
      $region19: #{conv_block.1} parent=5 // pred_region
        // Predicated region
        $region21: #{conv_block.1} parent=19 // pred_check
          %p204 = pneg %p57
        $region22: #{conv_block.1} parent=19 // pred_check_branch
          %206 = sbr.rel (%p204) target = $region24
        $region23: #{conv_block.1} parent=19 // pred_region
          %s207 = sand.u32 %s47, 1
          %s208 = scalar_lea.sflag [#allocation4], %s207
          %s209 = sand.u32 %s47, 1
          %s210 = smul.addr %s209, 64
          %s211 = scalar_lea.vmem [#allocation3], %s210
          %s212 = smul.u32 8, %s31
          %s213 = ssub.s32 9, %s212
          %p214 = scmp.lt.s32.totalorder %s213, 8
          %s215 = scalar_select %p214, %s213, 8
          %s216 = smul.u32 64, %s215
          %s217 = smul.u32 %s216, 2
          %s219 = ssub.s32 1024, %s217
          %220 = vsyncadd %s208, %s219
          %p221 = scmp.ne.s32.totalorder 0, %s217
          %s222 = smul.addr %s212, 2
          %s223 = smul.addr %s30, 18
          %s224 = sadd.s32 %s222, %s223
          %s225 = smul.addr %s224, 64
          %s226 = scalar_lea.hbm %s0, %s225
          %s227 = smul.u32 %s215, 2
          %s228 = smul.u32 4, %s227
          %s229 = sshll.u32 %s211, 4
          %s230 = int_to_ptr.vmem [resolvable:$true] %s229
          %s231 = sshll.u32 %s228, 4
          %235 = dma.hbm_to_vmem [thread:$0]  (%p221), %s226, %s231, %s230, %s208, 64, 64, 4
        $region24: #{conv_block.1} parent=19 // pred_fallthru
          _
        // Predicated region
        $region25: #{conv_block.1} parent=19 // pred_check
          %p236 = pneg %p89
        $region26: #{conv_block.1} parent=19 // pred_check_branch
          %238 = sbr.rel (%p236) target = $region28
        $region27: #{conv_block.1} parent=19 // pred_region
          %s239 = sand.u32 %s23, 1
          %s240 = scalar_lea.sflag [#allocation7], %s239
          %s241 = sand.u32 %s79, 1
          %s242 = smul.addr %s241, 8
          %s243 = scalar_lea.vmem [#allocation6], %s242
          %s244 = smul.u32 %s31, 8
          %s245 = sadd.s32 %s244, 8
          %s247 = ssub.s32 128, 128
          %248 = vsyncadd %s240, %s247
          %s249 = smul.addr %s245, 2
          %s250 = smul.addr %s30, 18
          %s251 = sadd.s32 %s249, %s250
          %s252 = smul.addr %s251, 64
          %s253 = scalar_lea.hbm %s1, %s252
          %s254 = sshll.u32 %s243, 4
          %s255 = int_to_ptr.vmem [resolvable:$true] %s254
          %260 = dma.hbm_to_vmem [thread:$0]  %s253, 128, %s255, %s240, 64, 64, 4
        $region28: #{conv_block.1} parent=19 // pred_fallthru
          _
      $region20: #{conv_block.1} parent=5 // pred_fallthru
        _
      %p261 = scmp.le.s32.totalorder 1, %s23
      %p262 = scmp.lt.s32.totalorder %s23, 3
      %p263 = pnand %p261, %p262
      %p264 = pneg %p263
      // Predicated region
      $region29: #{conv_block.1} parent=5 // pred_check
        _
      $region30: #{conv_block.1} parent=5 // pred_check_branch
        %266 = sbr.rel (%p263) target = $region32
      $region31: #{conv_block.1} parent=5 // pred_region
        %s267 = ssub.s32 %s23, 1
        %s268 = sand.u32 %s50, 1
        %s269 = scalar_lea.sflag [#allocation4], %s268
        %s270 = sand.u32 %s50, 1
        %s271 = smul.addr %s270, 64
        %s272 = scalar_lea.vmem [#allocation3], %s271
        // Predicated region
        $region33: #{conv_block.1} parent=31 // pred_check
          %p273 = pneg %p63
        $region34: #{conv_block.1} parent=31 // pred_check_branch
          %275 = sbr.rel (%p273) target = $region36
        $region35: #{conv_block.1} parent=31 // pred_region
          %276 = dma.done %s269, 1024
        $region36: #{conv_block.1} parent=31 // pred_fallthru
          _
        %s277 = sand.u32 %s28, 1
        %s278 = scalar_lea.sflag [#allocation7], %s277
        %s279 = sand.u32 %s82, 1
        %s280 = smul.addr %s279, 8
        %s281 = scalar_lea.vmem [#allocation6], %s280
        // Predicated region
        $region37: #{conv_block.1} parent=31 // pred_check
          %p282 = pneg %p95
        $region38: #{conv_block.1} parent=31 // pred_check_branch
          %284 = sbr.rel (%p282) target = $region40
        $region39: #{conv_block.1} parent=31 // pred_region
          %285 = dma.done %s278, 128
        $region40: #{conv_block.1} parent=31 // pred_fallthru
          _
        // Predicated region
        $region41: #{conv_block.1} parent=31 // pred_check
          %p286 = pneg %p116
        $region42: #{conv_block.1} parent=31 // pred_check_branch
          %288 = sbr.rel (%p286) target = $region44
        $region43: #{conv_block.1} parent=31 // pred_region
          %289 = dma.done [#allocation7], 512
        $region44: #{conv_block.1} parent=31 // pred_fallthru
          _
        %s290 = sand.u32 %s50, 1
        %s291 = scalar_lea.sflag [#allocation4], %s290
        %s292 = sand.u32 %s50, 1
        %s293 = smul.addr %s292, 64
        %s294 = scalar_lea.vmem [#allocation3], %s293
        %p295 = pneg %p63
        %p296 = pneg %p60
        %s297 = sand.u32 %s28, 1
        %s298 = scalar_lea.sflag [#allocation7], %s297
        %s299 = sand.u32 %s82, 1
        %s300 = smul.addr %s299, 8
        %s301 = scalar_lea.vmem [#allocation6], %s300
        %p302 = pneg %p95
        %p303 = pneg %p92
        %p304 = pneg %p116
        %p305 = pneg %p113
        %p306 = pneg %p144
        %p307 = pneg %p141
        %s308 = sand.u32 %s131, 1
        %s309 = scalar_lea.sflag [#allocation5], %s308
        %s310 = sand.u32 %s131, 1
        %s311 = smul.addr %s310, 32
        %s312 = scalar_lea.vmem [#allocation9], %s311
        %p313 = pneg %p172
        %p314 = pneg %p169
        %s315 = sand.u32 %s159, 1
        %s316 = scalar_lea.sflag [#allocation11], %s315
        %s317 = sand.u32 %s159, 1
        %s318 = smul.addr %s317, 2
        %s319 = scalar_lea.vmem [#allocation10], %s318
        %s320 = smul.u32 8, %s33
        %s321 = ssub.s32 9, %s320
        %p322 = scmp.lt.s32.totalorder %s321, 8
        %s323 = scalar_select %p322, %s321, 8
        %s324 = smul.u32 64, %s323
        %s325 = smul.u32 %s324, 2
        %s326 = smul.u32 %s33, 8
        %s327 = sadd.s32 %s326, 8
        %s328 = smul.u32 8, %s33
        %v330 = vld [vmem:[%s272] sm:$0xf]
        %v331 = vld [vmem:[%s272 + $0x4] sm:$0x1]
        %v332 = vld [vmem:[%s272 + $0x8] sm:$0xf]
        %v333 = vld [vmem:[%s272 + $0xc] sm:$0x1]
        %v334 = vld [vmem:[%s272 + $0x10] sm:$0xf]
        %v335 = vld [vmem:[%s272 + $0x14] sm:$0x1]
        %v336 = vld [vmem:[%s272 + $0x18] sm:$0xf]
        %v337 = vld [vmem:[%s272 + $0x1c] sm:$0x1]
        %v338 = vld [vmem:[%s272 + $0x20] sm:$0xf]
        %v339 = vld [vmem:[%s272 + $0x24] sm:$0x1]
        %v340 = vld [vmem:[%s272 + $0x28] sm:$0xf]
        %v341 = vld [vmem:[%s272 + $0x2c] sm:$0x1]
        %v342 = vld [vmem:[%s272 + $0x30] sm:$0xf]
        %v343 = vld [vmem:[%s272 + $0x34] sm:$0x1]
        %v344 = vld [vmem:[%s272 + $0x38] sm:$0xf]
        %v345 = vld [vmem:[%s272 + $0x3c] sm:$0x1]
        %v346 = vld [vmem:[%s281] sm:$0xf]
        %v347 = vld [vmem:[%s281 + $0x4] sm:$0x1]
        %v348 = vld [vmem:[#allocation8] sm:$0xf]
        %v349 = vld [vmem:[#allocation8 + $0x4] sm:$0xf]
        %v358 = vunpack.c.l.b16 %v330
        %v359 = vunpack.c.l.b16 %v332
        %v360 = vunpack.c.l.b16 %v334
        %v361 = vunpack.c.l.b16 %v336
        %v362 = vunpack.c.l.b16 %v338
        %v363 = vunpack.c.l.b16 %v340
        %v364 = vunpack.c.l.b16 %v342
        %v365 = vunpack.c.l.b16 %v344
        %v366 = vpack.c.b16 %v359, %v358
        %v367 = vpack.c.b16 %v361, %v360
        %v368 = vpack.c.b16 %v363, %v362
        %v369 = vpack.c.b16 %v365, %v364
        %v372 = vunpack.c.l.b16 %v348
        %v373 = vunpack.c.l.b16 %v349
        %v374 = vpack.c.b16 %v373, %v372
        %vm376 = vcmask 130048
        %v378 = vsel %vm376, %v366, 0
        %v381 = vsel %vm376, %v367, 0
        %v384 = vsel %vm376, %v368, 0
        %v387 = vsel %vm376, %v369, 0
        %389 = vmatprep.subr.bf16.mxu0 0
        %390 = vmatpush1.bf16.msra.mxu0 %v374
        %391 = vmatprep.subr.bf16.mxu0 0
        %392 = vmatpush1.bf16.msra.mxu0 0
        %393 = vmatprep.subr.bf16.mxu0 0
        %394 = vmatpush1.bf16.msra.mxu0 0
        %395 = vmatprep.subr.bf16.mxu0 0
        %396 = vmatpush1.bf16.msra.mxu0 0
        %397 = vmatprep.subr.bf16.mxu0 0
        %398 = vmatpush1.bf16.msra.mxu0 0
        %399 = vmatprep.subr.bf16.mxu0 0
        %400 = vmatpush1.bf16.msra.mxu0 0
        %401 = vmatprep.subr.bf16.mxu0 0
        %402 = vmatpush1.bf16.msra.mxu0 0
        %403 = vmatprep.subr.bf16.mxu0 0
        %404 = vmatpush1.bf16.msra.mxu0 0
        %405 = vmatprep.subr.bf16.mxu0 0
        %406 = vmatpush1.bf16.msra.mxu0 0
        %407 = vmatprep.subr.bf16.mxu0 0
        %408 = vmatpush1.bf16.msra.mxu0 0
        %409 = vmatprep.subr.bf16.mxu0 0
        %410 = vmatpush1.bf16.msra.mxu0 0
        %411 = vmatprep.subr.bf16.mxu0 0
        %412 = vmatpush1.bf16.msra.mxu0 0
        %413 = vmatprep.subr.bf16.mxu0 0
        %414 = vmatpush1.bf16.msra.mxu0 0
        %415 = vmatprep.subr.bf16.mxu0 0
        %416 = vmatpush1.bf16.msra.mxu0 0
        %417 = vmatprep.subr.bf16.mxu0 0
        %418 = vmatpush1.bf16.msra.mxu0 0
        %419 = vmatprep.subr.bf16.mxu0 0
        %420 = vmatpush1.bf16.msra.mxu0 0
        %421 = vmatprep.mubr.bf16.mxu0 0
        %422 = vmatmul.mubr.bf16.gmra.mrb[0].mxu0 %v378
        %v423 = vpop.f32.mrb[0].mxu0
        %v424 = vadd.f32 0.0, %v423
        %v425 = vpop.f32.mrb[0].mxu0
        %v426 = vpop.f32.mrb[0].mxu0
        %v427 = vadd.f32 0.0, %v426
        %v428 = vpop.f32.mrb[0].mxu0
        %429 = vmatprep.mubr.bf16.mxu0 0
        %430 = vmatmul.mubr.bf16.gmra.mrb[0].mxu0 %v381
        %v431 = vpop.f32.mrb[0].mxu0
        %v432 = vadd.f32 0.0, %v431
        %v433 = vpop.f32.mrb[0].mxu0
        %v434 = vpop.f32.mrb[0].mxu0
        %v435 = vadd.f32 0.0, %v434
        %v436 = vpop.f32.mrb[0].mxu0
        %437 = vmatprep.mubr.bf16.mxu0 0
        %438 = vmatmul.mubr.bf16.gmra.mrb[0].mxu0 %v384
        %v439 = vpop.f32.mrb[0].mxu0
        %v440 = vadd.f32 0.0, %v439
        %v441 = vpop.f32.mrb[0].mxu0
        %v442 = vpop.f32.mrb[0].mxu0
        %v443 = vadd.f32 0.0, %v442
        %v444 = vpop.f32.mrb[0].mxu0
        %445 = vmatprep.mubr.bf16.mxu0 0
        %446 = vmatmul.mubr.bf16.gmra.mrb[0].mxu0 %v387
        %v447 = vpop.f32.mrb[0].mxu0
        %v448 = vadd.f32 0.0, %v447
        %v449 = vpop.f32.mrb[0].mxu0
        %v450 = vpop.f32.mrb[0].mxu0
        %v451 = vadd.f32 0.0, %v450
        %v452 = vpop.f32.mrb[0].mxu0
        %453 = vdwg.mxu0
        %454 = vst [vmem:[#allocation2] sm:$0xff] %v424
        %455 = vst [vmem:[#allocation2 + $0x8] sm:$0xff] %v427
        %456 = vst [vmem:[#allocation2 + $0x10] sm:$0xff] %v432
        %457 = vst [vmem:[#allocation2 + $0x18] sm:$0xff] %v435
        %458 = vst [vmem:[#allocation2 + $0x20] sm:$0xff] %v440
        %459 = vst [vmem:[#allocation2 + $0x28] sm:$0xff] %v443
        %460 = vst [vmem:[#allocation2 + $0x30] sm:$0xff] %v448
        %461 = vst [vmem:[#allocation2 + $0x38] sm:$0xff] %v451
        %vm462 = vsmask.f32 3328
        %vm463 = vsmask.f32 7440
        %vm464 = vmor %vm462, %vm463
        %v466 = vshrl.u32 %v330, 16
        %v468 = vrot.slane %v466, 4
        %v469 = vshll.u32 %v330, 16
        %v471 = vrot.slane %v469, 5
        %v472 = vor.u32 %v468, %v471
        %v473 = vrot.slane %v472, 4
        %v475 = vshll.u32 %v331, 16
        %v477 = vrot.slane %v475, 5
        %v478 = vsel %vm464, %v473, %v477
        %v480 = vshrl.u32 %v332, 16
        %v482 = vrot.slane %v480, 4
        %v483 = vshll.u32 %v332, 16
        %v485 = vrot.slane %v483, 5
        %v486 = vor.u32 %v482, %v485
        %v487 = vrot.slane %v486, 4
        %v489 = vshll.u32 %v333, 16
        %v491 = vrot.slane %v489, 5
        %v492 = vsel %vm464, %v487, %v491
        %v494 = vshrl.u32 %v334, 16
        %v496 = vrot.slane %v494, 4
        %v497 = vshll.u32 %v334, 16
        %v499 = vrot.slane %v497, 5
        %v500 = vor.u32 %v496, %v499
        %v501 = vrot.slane %v500, 4
        %v503 = vshll.u32 %v335, 16
        %v505 = vrot.slane %v503, 5
        %v506 = vsel %vm464, %v501, %v505
        %v508 = vshrl.u32 %v336, 16
        %v510 = vrot.slane %v508, 4
        %v511 = vshll.u32 %v336, 16
        %v513 = vrot.slane %v511, 5
        %v514 = vor.u32 %v510, %v513
        %v515 = vrot.slane %v514, 4
        %v517 = vshll.u32 %v337, 16
        %v519 = vrot.slane %v517, 5
        %v520 = vsel %vm464, %v515, %v519
        %v522 = vshrl.u32 %v338, 16
        %v524 = vrot.slane %v522, 4
        %v525 = vshll.u32 %v338, 16
        %v527 = vrot.slane %v525, 5
        %v528 = vor.u32 %v524, %v527
        %v529 = vrot.slane %v528, 4
        %v531 = vshll.u32 %v339, 16
        %v533 = vrot.slane %v531, 5
        %v534 = vsel %vm464, %v529, %v533
        %v536 = vshrl.u32 %v340, 16
        %v538 = vrot.slane %v536, 4
        %v539 = vshll.u32 %v340, 16
        %v541 = vrot.slane %v539, 5
        %v542 = vor.u32 %v538, %v541
        %v543 = vrot.slane %v542, 4
        %v545 = vshll.u32 %v341, 16
        %v547 = vrot.slane %v545, 5
        %v548 = vsel %vm464, %v543, %v547
        %v550 = vshrl.u32 %v342, 16
        %v552 = vrot.slane %v550, 4
        %v553 = vshll.u32 %v342, 16
        %v555 = vrot.slane %v553, 5
        %v556 = vor.u32 %v552, %v555
        %v557 = vrot.slane %v556, 4
        %v559 = vshll.u32 %v343, 16
        %v561 = vrot.slane %v559, 5
        %v562 = vsel %vm464, %v557, %v561
        %v564 = vshrl.u32 %v344, 16
        %v566 = vrot.slane %v564, 4
        %v567 = vshll.u32 %v344, 16
        %v569 = vrot.slane %v567, 5
        %v570 = vor.u32 %v566, %v569
        %v571 = vrot.slane %v570, 4
        %v573 = vshll.u32 %v345, 16
        %v575 = vrot.slane %v573, 5
        %v576 = vsel %vm464, %v571, %v575
        %s577 = scalar_lea.vmem [#allocation8], 8
        %v578 = vld [vmem:[%s577] sm:$0xf]
        %v579 = vld [vmem:[%s577 + $0x4] sm:$0xf]
        %v580 = vunpack.c.l.b16 %v478
        %v581 = vunpack.c.l.b16 %v492
        %v582 = vunpack.c.l.b16 %v506
        %v583 = vunpack.c.l.b16 %v520
        %v584 = vunpack.c.l.b16 %v534
        %v585 = vunpack.c.l.b16 %v548
        %v586 = vunpack.c.l.b16 %v562
        %v587 = vunpack.c.l.b16 %v576
        %v588 = vpack.c.b16 %v581, %v580
        %v589 = vpack.c.b16 %v583, %v582
        %v590 = vpack.c.b16 %v585, %v584
        %v591 = vpack.c.b16 %v587, %v586
        %v594 = vunpack.c.l.b16 %v578
        %v595 = vunpack.c.l.b16 %v579
        %v596 = vpack.c.b16 %v595, %v594
        %v599 = vsel %vm376, %v588, 0
        %v602 = vsel %vm376, %v589, 0
        %v605 = vsel %vm376, %v590, 0
        %v608 = vsel %vm376, %v591, 0
        %610 = vmatprep.subr.bf16.mxu0 0
        %611 = vmatpush1.bf16.msra.mxu0 %v596
        %612 = vmatprep.subr.bf16.mxu0 0
        %613 = vmatpush1.bf16.msra.mxu0 0
        %614 = vmatprep.subr.bf16.mxu0 0
        %615 = vmatpush1.bf16.msra.mxu0 0
        %616 = vmatprep.subr.bf16.mxu0 0
        %617 = vmatpush1.bf16.msra.mxu0 0
        %618 = vmatprep.subr.bf16.mxu0 0
        %619 = vmatpush1.bf16.msra.mxu0 0
        %620 = vmatprep.subr.bf16.mxu0 0
        %621 = vmatpush1.bf16.msra.mxu0 0
        %622 = vmatprep.subr.bf16.mxu0 0
        %623 = vmatpush1.bf16.msra.mxu0 0
        %624 = vmatprep.subr.bf16.mxu0 0
        %625 = vmatpush1.bf16.msra.mxu0 0
        %626 = vmatprep.subr.bf16.mxu0 0
        %627 = vmatpush1.bf16.msra.mxu0 0
        %628 = vmatprep.subr.bf16.mxu0 0
        %629 = vmatpush1.bf16.msra.mxu0 0
        %630 = vmatprep.subr.bf16.mxu0 0
        %631 = vmatpush1.bf16.msra.mxu0 0
        %632 = vmatprep.subr.bf16.mxu0 0
        %633 = vmatpush1.bf16.msra.mxu0 0
        %634 = vmatprep.subr.bf16.mxu0 0
        %635 = vmatpush1.bf16.msra.mxu0 0
        %636 = vmatprep.subr.bf16.mxu0 0
        %637 = vmatpush1.bf16.msra.mxu0 0
        %638 = vmatprep.subr.bf16.mxu0 0
        %639 = vmatpush1.bf16.msra.mxu0 0
        %640 = vmatprep.subr.bf16.mxu0 0
        %641 = vmatpush1.bf16.msra.mxu0 0
        %642 = vmatprep.mubr.bf16.mxu0 0
        %643 = vmatmul.mubr.bf16.gmra.mrb[0].mxu0 %v599
        %v644 = vpop.f32.mrb[0].mxu0
        %v645 = vadd.f32 0.0, %v644
        %v646 = vpop.f32.mrb[0].mxu0
        %v647 = vpop.f32.mrb[0].mxu0
        %v648 = vadd.f32 0.0, %v647
        %v649 = vpop.f32.mrb[0].mxu0
        %650 = vmatprep.mubr.bf16.mxu0 0
        %651 = vmatmul.mubr.bf16.gmra.mrb[0].mxu0 %v602
        %v652 = vpop.f32.mrb[0].mxu0
        %v653 = vadd.f32 0.0, %v652
        %v654 = vpop.f32.mrb[0].mxu0
        %v655 = vpop.f32.mrb[0].mxu0
        %v656 = vadd.f32 0.0, %v655
        %v657 = vpop.f32.mrb[0].mxu0
        %658 = vmatprep.mubr.bf16.mxu0 0
        %659 = vmatmul.mubr.bf16.gmra.mrb[0].mxu0 %v605
        %v660 = vpop.f32.mrb[0].mxu0
        %v661 = vadd.f32 0.0, %v660
        %v662 = vpop.f32.mrb[0].mxu0
        %v663 = vpop.f32.mrb[0].mxu0
        %v664 = vadd.f32 0.0, %v663
        %v665 = vpop.f32.mrb[0].mxu0
        %666 = vmatprep.mubr.bf16.mxu0 0
        %667 = vmatmul.mubr.bf16.gmra.mrb[0].mxu0 %v608
        %v668 = vpop.f32.mrb[0].mxu0
        %v669 = vadd.f32 0.0, %v668
        %v670 = vpop.f32.mrb[0].mxu0
        %v671 = vpop.f32.mrb[0].mxu0
        %v672 = vadd.f32 0.0, %v671
        %v673 = vpop.f32.mrb[0].mxu0
        %674 = vdwg.mxu0
        %v675 = vld [vmem:[#allocation2] sm:$0xff]
        %v676 = vld [vmem:[#allocation2 + $0x8] sm:$0xff]
        %v677 = vld [vmem:[#allocation2 + $0x10] sm:$0xff]
        %v678 = vld [vmem:[#allocation2 + $0x18] sm:$0xff]
        %v679 = vld [vmem:[#allocation2 + $0x20] sm:$0xff]
        %v680 = vld [vmem:[#allocation2 + $0x28] sm:$0xff]
        %v681 = vld [vmem:[#allocation2 + $0x30] sm:$0xff]
        %v682 = vld [vmem:[#allocation2 + $0x38] sm:$0xff]
        %v683 = vadd.f32 %v675, %v645
        %v684 = vadd.f32 %v676, %v648
        %v685 = vadd.f32 %v677, %v653
        %v686 = vadd.f32 %v678, %v656
        %v687 = vadd.f32 %v679, %v661
        %v688 = vadd.f32 %v680, %v664
        %v689 = vadd.f32 %v681, %v669
        %v690 = vadd.f32 %v682, %v672
        %691 = vst [vmem:[#allocation2] sm:$0xff] %v683
        %692 = vst [vmem:[#allocation2 + $0x8] sm:$0xff] %v684
        %693 = vst [vmem:[#allocation2 + $0x10] sm:$0xff] %v685
        %694 = vst [vmem:[#allocation2 + $0x18] sm:$0xff] %v686
        %695 = vst [vmem:[#allocation2 + $0x20] sm:$0xff] %v687
        %696 = vst [vmem:[#allocation2 + $0x28] sm:$0xff] %v688
        %697 = vst [vmem:[#allocation2 + $0x30] sm:$0xff] %v689
        %698 = vst [vmem:[#allocation2 + $0x38] sm:$0xff] %v690
        %s699 = scalar_lea.vmem [#allocation8], 16
        %v700 = vld [vmem:[%s699] sm:$0xf]
        %v701 = vld [vmem:[%s699 + $0x4] sm:$0xf]
        %v703 = vunpack.c.l.b16 %v346
        %v704 = vpack.c.b16 %v360, %v359
        %v705 = vpack.c.b16 %v362, %v361
        %v706 = vpack.c.b16 %v364, %v363
        %v707 = vpack.c.b16 %v703, %v365
        %v710 = vunpack.c.l.b16 %v700
        %v711 = vunpack.c.l.b16 %v701
        %v712 = vpack.c.b16 %v711, %v710
        %v715 = vsel %vm376, %v704, 0
        %v718 = vsel %vm376, %v705, 0
        %v721 = vsel %vm376, %v706, 0
        %v724 = vsel %vm376, %v707, 0
        %726 = vmatprep.subr.bf16.mxu0 0
        %727 = vmatpush1.bf16.msra.mxu0 %v712
        %728 = vmatprep.subr.bf16.mxu0 0
        %729 = vmatpush1.bf16.msra.mxu0 0
        %730 = vmatprep.subr.bf16.mxu0 0
        %731 = vmatpush1.bf16.msra.mxu0 0
        %732 = vmatprep.subr.bf16.mxu0 0
        %733 = vmatpush1.bf16.msra.mxu0 0
        %734 = vmatprep.subr.bf16.mxu0 0
        %735 = vmatpush1.bf16.msra.mxu0 0
        %736 = vmatprep.subr.bf16.mxu0 0
        %737 = vmatpush1.bf16.msra.mxu0 0
        %738 = vmatprep.subr.bf16.mxu0 0
        %739 = vmatpush1.bf16.msra.mxu0 0
        %740 = vmatprep.subr.bf16.mxu0 0
        %741 = vmatpush1.bf16.msra.mxu0 0
        %742 = vmatprep.subr.bf16.mxu0 0
        %743 = vmatpush1.bf16.msra.mxu0 0
        %744 = vmatprep.subr.bf16.mxu0 0
        %745 = vmatpush1.bf16.msra.mxu0 0
        %746 = vmatprep.subr.bf16.mxu0 0
        %747 = vmatpush1.bf16.msra.mxu0 0
        %748 = vmatprep.subr.bf16.mxu0 0
        %749 = vmatpush1.bf16.msra.mxu0 0
        %750 = vmatprep.subr.bf16.mxu0 0
        %751 = vmatpush1.bf16.msra.mxu0 0
        %752 = vmatprep.subr.bf16.mxu0 0
        %753 = vmatpush1.bf16.msra.mxu0 0
        %754 = vmatprep.subr.bf16.mxu0 0
        %755 = vmatpush1.bf16.msra.mxu0 0
        %756 = vmatprep.subr.bf16.mxu0 0
        %757 = vmatpush1.bf16.msra.mxu0 0
        %758 = vmatprep.mubr.bf16.mxu0 0
        %759 = vmatmul.mubr.bf16.gmra.mrb[0].mxu0 %v715
        %v760 = vpop.f32.mrb[0].mxu0
        %v761 = vadd.f32 0.0, %v760
        %v762 = vpop.f32.mrb[0].mxu0
        %v763 = vpop.f32.mrb[0].mxu0
        %v764 = vadd.f32 0.0, %v763
        %v765 = vpop.f32.mrb[0].mxu0
        %766 = vmatprep.mubr.bf16.mxu0 0
        %767 = vmatmul.mubr.bf16.gmra.mrb[0].mxu0 %v718
        %v768 = vpop.f32.mrb[0].mxu0
        %v769 = vadd.f32 0.0, %v768
        %v770 = vpop.f32.mrb[0].mxu0
        %v771 = vpop.f32.mrb[0].mxu0
        %v772 = vadd.f32 0.0, %v771
        %v773 = vpop.f32.mrb[0].mxu0
        %774 = vmatprep.mubr.bf16.mxu0 0
        %775 = vmatmul.mubr.bf16.gmra.mrb[0].mxu0 %v721
        %v776 = vpop.f32.mrb[0].mxu0
        %v777 = vadd.f32 0.0, %v776
        %v778 = vpop.f32.mrb[0].mxu0
        %v779 = vpop.f32.mrb[0].mxu0
        %v780 = vadd.f32 0.0, %v779
        %v781 = vpop.f32.mrb[0].mxu0
        %782 = vmatprep.mubr.bf16.mxu0 0
        %783 = vmatmul.mubr.bf16.gmra.mrb[0].mxu0 %v724
        %v784 = vpop.f32.mrb[0].mxu0
        %v785 = vadd.f32 0.0, %v784
        %v786 = vpop.f32.mrb[0].mxu0
        %v787 = vpop.f32.mrb[0].mxu0
        %v788 = vadd.f32 0.0, %v787
        %v789 = vpop.f32.mrb[0].mxu0
        %790 = vdwg.mxu0
        %v791 = vld [vmem:[#allocation2] sm:$0xff]
        %v792 = vld [vmem:[#allocation2 + $0x8] sm:$0xff]
        %v793 = vld [vmem:[#allocation2 + $0x10] sm:$0xff]
        %v794 = vld [vmem:[#allocation2 + $0x18] sm:$0xff]
        %v795 = vld [vmem:[#allocation2 + $0x20] sm:$0xff]
        %v796 = vld [vmem:[#allocation2 + $0x28] sm:$0xff]
        %v797 = vld [vmem:[#allocation2 + $0x30] sm:$0xff]
        %v798 = vld [vmem:[#allocation2 + $0x38] sm:$0xff]
        %v799 = vadd.f32 %v791, %v761
        %v800 = vadd.f32 %v792, %v764
        %v801 = vadd.f32 %v793, %v769
        %v802 = vadd.f32 %v794, %v772
        %v803 = vadd.f32 %v795, %v777
        %v804 = vadd.f32 %v796, %v780
        %v805 = vadd.f32 %v797, %v785
        %v806 = vadd.f32 %v798, %v788
        %807 = vst [vmem:[#allocation2] sm:$0xff] %v799
        %808 = vst [vmem:[#allocation2 + $0x8] sm:$0xff] %v800
        %809 = vst [vmem:[#allocation2 + $0x10] sm:$0xff] %v801
        %810 = vst [vmem:[#allocation2 + $0x18] sm:$0xff] %v802
        %811 = vst [vmem:[#allocation2 + $0x20] sm:$0xff] %v803
        %812 = vst [vmem:[#allocation2 + $0x28] sm:$0xff] %v804
        %813 = vst [vmem:[#allocation2 + $0x30] sm:$0xff] %v805
        %814 = vst [vmem:[#allocation2 + $0x38] sm:$0xff] %v806
        %v816 = vshrl.u32 %v346, 16
        %v818 = vrot.slane %v816, 4
        %v819 = vshll.u32 %v346, 16
        %v821 = vrot.slane %v819, 5
        %v822 = vor.u32 %v818, %v821
        %v823 = vrot.slane %v822, 4
        %v825 = vshll.u32 %v347, 16
        %v827 = vrot.slane %v825, 5
        %v828 = vsel %vm464, %v823, %v827
        %s829 = scalar_lea.vmem [#allocation8], 24
        %v830 = vld [vmem:[%s829] sm:$0xf]
        %v831 = vld [vmem:[%s829 + $0x4] sm:$0xf]
        %v832 = vunpack.c.l.b16 %v828
        %v833 = vpack.c.b16 %v582, %v581
        %v834 = vpack.c.b16 %v584, %v583
        %v835 = vpack.c.b16 %v586, %v585
        %v836 = vpack.c.b16 %v832, %v587
        %v839 = vunpack.c.l.b16 %v830
        %v840 = vunpack.c.l.b16 %v831
        %v841 = vpack.c.b16 %v840, %v839
        %v844 = vsel %vm376, %v833, 0
        %v847 = vsel %vm376, %v834, 0
        %v850 = vsel %vm376, %v835, 0
        %v853 = vsel %vm376, %v836, 0
        %855 = vmatprep.subr.bf16.mxu0 0
        %856 = vmatpush1.bf16.msra.mxu0 %v841
        %857 = vmatprep.subr.bf16.mxu0 0
        %858 = vmatpush1.bf16.msra.mxu0 0
        %859 = vmatprep.subr.bf16.mxu0 0
        %860 = vmatpush1.bf16.msra.mxu0 0
        %861 = vmatprep.subr.bf16.mxu0 0
        %862 = vmatpush1.bf16.msra.mxu0 0
        %863 = vmatprep.subr.bf16.mxu0 0
        %864 = vmatpush1.bf16.msra.mxu0 0
        %865 = vmatprep.subr.bf16.mxu0 0
        %866 = vmatpush1.bf16.msra.mxu0 0
        %867 = vmatprep.subr.bf16.mxu0 0
        %868 = vmatpush1.bf16.msra.mxu0 0
        %869 = vmatprep.subr.bf16.mxu0 0
        %870 = vmatpush1.bf16.msra.mxu0 0
        %871 = vmatprep.subr.bf16.mxu0 0
        %872 = vmatpush1.bf16.msra.mxu0 0
        %873 = vmatprep.subr.bf16.mxu0 0
        %874 = vmatpush1.bf16.msra.mxu0 0
        %875 = vmatprep.subr.bf16.mxu0 0
        %876 = vmatpush1.bf16.msra.mxu0 0
        %877 = vmatprep.subr.bf16.mxu0 0
        %878 = vmatpush1.bf16.msra.mxu0 0
        %879 = vmatprep.subr.bf16.mxu0 0
        %880 = vmatpush1.bf16.msra.mxu0 0
        %881 = vmatprep.subr.bf16.mxu0 0
        %882 = vmatpush1.bf16.msra.mxu0 0
        %883 = vmatprep.subr.bf16.mxu0 0
        %884 = vmatpush1.bf16.msra.mxu0 0
        %885 = vmatprep.subr.bf16.mxu0 0
        %886 = vmatpush1.bf16.msra.mxu0 0
        %887 = vmatprep.mubr.bf16.mxu0 0
        %888 = vmatmul.mubr.bf16.gmra.mrb[0].mxu0 %v844
        %v889 = vpop.f32.mrb[0].mxu0
        %v890 = vadd.f32 0.0, %v889
        %v891 = vpop.f32.mrb[0].mxu0
        %v892 = vpop.f32.mrb[0].mxu0
        %v893 = vadd.f32 0.0, %v892
        %v894 = vpop.f32.mrb[0].mxu0
        %895 = vmatprep.mubr.bf16.mxu0 0
        %896 = vmatmul.mubr.bf16.gmra.mrb[0].mxu0 %v847
        %v897 = vpop.f32.mrb[0].mxu0
        %v898 = vadd.f32 0.0, %v897
        %v899 = vpop.f32.mrb[0].mxu0
        %v900 = vpop.f32.mrb[0].mxu0
        %v901 = vadd.f32 0.0, %v900
        %v902 = vpop.f32.mrb[0].mxu0
        %903 = vmatprep.mubr.bf16.mxu0 0
        %904 = vmatmul.mubr.bf16.gmra.mrb[0].mxu0 %v850
        %v905 = vpop.f32.mrb[0].mxu0
        %v906 = vadd.f32 0.0, %v905
        %v907 = vpop.f32.mrb[0].mxu0
        %v908 = vpop.f32.mrb[0].mxu0
        %v909 = vadd.f32 0.0, %v908
        %v910 = vpop.f32.mrb[0].mxu0
        %911 = vmatprep.mubr.bf16.mxu0 0
        %912 = vmatmul.mubr.bf16.gmra.mrb[0].mxu0 %v853
        %v913 = vpop.f32.mrb[0].mxu0
        %v914 = vadd.f32 0.0, %v913
        %v915 = vpop.f32.mrb[0].mxu0
        %v916 = vpop.f32.mrb[0].mxu0
        %v917 = vadd.f32 0.0, %v916
        %v918 = vpop.f32.mrb[0].mxu0
        %919 = vdwg.mxu0
        %v920 = vld [vmem:[#allocation2] sm:$0xff]
        %v921 = vld [vmem:[#allocation2 + $0x8] sm:$0xff]
        %v922 = vld [vmem:[#allocation2 + $0x10] sm:$0xff]
        %v923 = vld [vmem:[#allocation2 + $0x18] sm:$0xff]
        %v924 = vld [vmem:[#allocation2 + $0x20] sm:$0xff]
        %v925 = vld [vmem:[#allocation2 + $0x28] sm:$0xff]
        %v926 = vld [vmem:[#allocation2 + $0x30] sm:$0xff]
        %v927 = vld [vmem:[#allocation2 + $0x38] sm:$0xff]
        %v928 = vadd.f32 %v920, %v890
        %v929 = vadd.f32 %v921, %v893
        %v930 = vadd.f32 %v922, %v898
        %v931 = vadd.f32 %v923, %v901
        %v932 = vadd.f32 %v924, %v906
        %v933 = vadd.f32 %v925, %v909
        %v934 = vadd.f32 %v926, %v914
        %v935 = vadd.f32 %v927, %v917
        %936 = vst [vmem:[#allocation2] sm:$0xff] %v928
        %937 = vst [vmem:[#allocation2 + $0x8] sm:$0xff] %v929
        %938 = vst [vmem:[#allocation2 + $0x10] sm:$0xff] %v930
        %939 = vst [vmem:[#allocation2 + $0x18] sm:$0xff] %v931
        %940 = vst [vmem:[#allocation2 + $0x20] sm:$0xff] %v932
        %941 = vst [vmem:[#allocation2 + $0x28] sm:$0xff] %v933
        %942 = vst [vmem:[#allocation2 + $0x30] sm:$0xff] %v934
        %943 = vst [vmem:[#allocation2 + $0x38] sm:$0xff] %v935
        %v944 = vld [vmem:[#allocation2] sm:$0xff]
        %v945 = vld [vmem:[#allocation2 + $0x8] sm:$0xff]
        %v946 = vld [vmem:[#allocation2 + $0x10] sm:$0xff]
        %v947 = vld [vmem:[#allocation2 + $0x18] sm:$0xff]
        %v948 = vld [vmem:[#allocation2 + $0x20] sm:$0xff]
        %v949 = vld [vmem:[#allocation2 + $0x28] sm:$0xff]
        %v950 = vld [vmem:[#allocation2 + $0x30] sm:$0xff]
        %v951 = vld [vmem:[#allocation2 + $0x38] sm:$0xff]
        %v952 = vpack.c.bf16 %v945, %v944
        %v953 = vpack.c.bf16 %v947, %v946
        %v954 = vpack.c.bf16 %v949, %v948
        %v955 = vpack.c.bf16 %v951, %v950
        %v960 = vunpack.c.l.b16 %v952
        %v961 = vunpack.c.h.b16 %v952
        %v962 = vunpack.c.l.b16 %v953
        %v963 = vunpack.c.h.b16 %v953
        %v964 = vunpack.c.l.b16 %v954
        %v965 = vunpack.c.h.b16 %v954
        %v966 = vunpack.c.l.b16 %v955
        %v967 = vunpack.c.h.b16 %v955
        %v968 = vpack.c.b16 %v960, %v960
        %v969 = vpack.c.b16 %v961, %v961
        %v970 = vpack.c.b16 %v962, %v962
        %v971 = vpack.c.b16 %v963, %v963
        %v972 = vpack.c.b16 %v964, %v964
        %v973 = vpack.c.b16 %v965, %v965
        %v974 = vpack.c.b16 %v966, %v966
        %v975 = vpack.c.b16 %v967, %v967
        %vm984 = vcmask 60416
        %985 = vst.msk [vmem:[%s312] sm:$0xf] %vm984, %v968
        %986 = vst.msk [vmem:[%s312 + $0x4] sm:$0xf] %vm984, %v969
        %987 = vst.msk [vmem:[%s312 + $0x8] sm:$0xf] %vm984, %v970
        %988 = vst.msk [vmem:[%s312 + $0xc] sm:$0xf] %vm984, %v971
        %989 = vst.msk [vmem:[%s312 + $0x10] sm:$0xf] %vm984, %v972
        %990 = vst.msk [vmem:[%s312 + $0x14] sm:$0xf] %vm984, %v973
        %991 = vst.msk [vmem:[%s312 + $0x18] sm:$0xf] %vm984, %v974
        %992 = vst.msk [vmem:[%s312 + $0x1c] sm:$0xf] %vm984, %v975
        %v993 = vadd.f32 %v944, %v945
        %v994 = vadd.f32 %v993, %v946
        %v995 = vadd.f32 %v994, %v947
        %v996 = vadd.f32 %v995, %v948
        %v997 = vadd.f32 %v996, %v949
        %v998 = vadd.f32 %v997, %v950
        %v999 = vadd.f32 %v998, %v951
        %v1000 = vrot.slane %v999, 4
        %v1001 = vadd.f32 %v999, %v1000
        %v1002 = vrot.slane %v1001, 2
        %v1003 = vadd.f32 %v1001, %v1002
        %v1004 = vrot.slane %v1003, 1
        %v1005 = vadd.f32 %v1003, %v1004
        %v1006 = vmul.f32 %v1005, 0.015625
        %v1007 = vsub.f32 %v944, %v1006
        %v1008 = vsub.f32 %v945, %v1006
        %v1009 = vsub.f32 %v946, %v1006
        %v1010 = vsub.f32 %v947, %v1006
        %v1011 = vsub.f32 %v948, %v1006
        %v1012 = vsub.f32 %v949, %v1006
        %v1013 = vsub.f32 %v950, %v1006
        %v1014 = vsub.f32 %v951, %v1006
        %v1015 = vmul.f32 %v1007, %v1007
        %v1016 = vmul.f32 %v1008, %v1008
        %v1017 = vmul.f32 %v1009, %v1009
        %v1018 = vmul.f32 %v1010, %v1010
        %v1019 = vmul.f32 %v1011, %v1011
        %v1020 = vmul.f32 %v1012, %v1012
        %v1021 = vmul.f32 %v1013, %v1013
        %v1022 = vmul.f32 %v1014, %v1014
        %v1023 = vadd.f32 %v1015, %v1016
        %v1024 = vadd.f32 %v1023, %v1017
        %v1025 = vadd.f32 %v1024, %v1018
        %v1026 = vadd.f32 %v1025, %v1019
        %v1027 = vadd.f32 %v1026, %v1020
        %v1028 = vadd.f32 %v1027, %v1021
        %v1029 = vadd.f32 %v1028, %v1022
        %v1030 = vrot.slane %v1029, 4
        %v1031 = vadd.f32 %v1029, %v1030
        %v1032 = vrot.slane %v1031, 2
        %v1033 = vadd.f32 %v1031, %v1032
        %v1034 = vrot.slane %v1033, 1
        %v1035 = vadd.f32 %v1033, %v1034
        %vm1036 = vcmask 1040384
        %v1037 = vsel %vm1036, %v1006, %v1035
        %1038 = vst [vmem:[%s319] sm:$0x3] %v1037
        %s1039 = sand.u32 %s131, 1
        %s1040 = scalar_lea.sflag [#allocation5], %s1039
        %s1041 = sand.u32 %s131, 1
        %s1042 = smul.addr %s1041, 32
        %s1043 = scalar_lea.vmem [#allocation9], %s1042
        %s1044 = sand.u32 %s159, 1
        %s1045 = scalar_lea.sflag [#allocation11], %s1044
        %s1046 = sand.u32 %s159, 1
        %s1047 = smul.addr %s1046, 2
        %s1048 = scalar_lea.vmem [#allocation10], %s1047
        // Predicated region
        $region45: #{conv_block.1} parent=31 // pred_check
          %p1049 = pneg %p141
        $region46: #{conv_block.1} parent=31 // pred_check_branch
          %1051 = sbr.rel (%p1049) target = $region48
        $region47: #{conv_block.1} parent=31 // pred_region
          %s1052 = smul.u32 8, %s33
          %s1054 = ssub.s32 512, 512
          %1055 = vsyncadd %s1040, %s1054
          %s1056 = smul.addr %s32, 8
          %s1057 = sadd.s32 %s1052, %s1056
          %s1058 = smul.addr %s1057, 64
          %s1059 = scalar_lea.hbm %s3, %s1058
          %s1060 = sshll.u32 %s1043, 4
          %s1061 = int_to_ptr.vmem [resolvable:$true] %s1060
          %1066 = dma.vmem_to_hbm [thread:$0]  %s1061, 512, %s1059, %s1040, 64, 64, 4
        $region48: #{conv_block.1} parent=31 // pred_fallthru
          _
        // Predicated region
        $region49: #{conv_block.1} parent=31 // pred_check
          %p1067 = pneg %p169
        $region50: #{conv_block.1} parent=31 // pred_check_branch
          %1069 = sbr.rel (%p1067) target = $region52
        $region51: #{conv_block.1} parent=31 // pred_region
          %s1071 = ssub.s32 32, 32
          %1072 = vsyncadd %s1045, %s1071
          %s1073 = sadd.s32 %s33, %s32
          %s1074 = smul.addr %s1073, 32
          %s1075 = scalar_lea.hbm %s4, %s1074
          %s1077 = sshll.u32 %s1048, 4
          %s1078 = int_to_ptr.vmem [resolvable:$true] %s1077
          %1080 = dma.vmem_to_hbm [thread:$0]  %s1078, 32, %s1075, %s1045
        $region52: #{conv_block.1} parent=31 // pred_fallthru
          _
      $region32: #{conv_block.1} parent=5 // pred_fallthru
        _
      %p1081 = scmp.le.s32.totalorder 2, %s23
      // Predicated region
      $region53: #{conv_block.1} parent=5 // pred_check
        %p1082 = pneg %p1081
      $region54: #{conv_block.1} parent=5 // pred_check_branch
        %1084 = sbr.rel (%p1082) target = $region56
      $region55: #{conv_block.1} parent=5 // pred_region
        %s1085 = ssub.s32 %s23, 2
        // Predicated region
        $region57: #{conv_block.1} parent=55 // pred_check
          %p1086 = pneg %p147
        $region58: #{conv_block.1} parent=55 // pred_check_branch
          %1088 = sbr.rel (%p1086) target = $region60
        $region59: #{conv_block.1} parent=55 // pred_region
          %s1089 = sand.u32 %s132, 1
          %s1090 = scalar_lea.sflag [#allocation5], %s1089
          %s1091 = sand.u32 %s132, 1
          %s1092 = smul.addr %s1091, 32
          %s1093 = scalar_lea.vmem [#allocation9], %s1092
          %1094 = dma.done %s1090, 512
        $region60: #{conv_block.1} parent=55 // pred_fallthru
          _
        // Predicated region
        $region61: #{conv_block.1} parent=55 // pred_check
          %p1095 = pneg %p175
        $region62: #{conv_block.1} parent=55 // pred_check_branch
          %1097 = sbr.rel (%p1095) target = $region64
        $region63: #{conv_block.1} parent=55 // pred_region
          %s1098 = sand.u32 %s160, 1
          %s1099 = scalar_lea.sflag [#allocation11], %s1098
          %s1100 = sand.u32 %s160, 1
          %s1101 = smul.addr %s1100, 2
          %s1102 = scalar_lea.vmem [#allocation10], %s1101
          %1103 = dma.done %s1099, 32
        $region64: #{conv_block.1} parent=55 // pred_fallthru
          _
      $region56: #{conv_block.1} parent=5 // pred_fallthru
        _
    $region6: #{conv_block.1} parent=1 // loop_footer
      %s27 = sadd.s32 1, %s23
    $region7: #{conv_block.1} parent=1 // loop_footer_branch
      %22 = sbr.rel target = $region3
    $region8: #{conv_block.1} parent=1 // loop_exit
      _
    %1104 = vsyncpa [#allocation4], 1
    %s1105 = scalar_lea.sflag [#allocation4], 1
    %1106 = vsyncpa %s1105, 1
    %1107 = vsyncpa [#allocation7], 1
    %s1108 = scalar_lea.sflag [#allocation7], 1
    %1109 = vsyncpa %s1108, 1
    %1110 = vsyncpa [#allocation5], 1
    %s1111 = scalar_lea.sflag [#allocation5], 1
    %1112 = vsyncpa %s1111, 1
    %1113 = vsyncpa [#allocation11], 1
    %s1114 = scalar_lea.sflag [#allocation11], 1
    %1115 = vsyncpa %s1114, 1

</llo_original>
